<compile_context>
chip_gen: v7x
topology: tpu7x:2x2x1
jax: 0.10.0
libtpu: 0.0.40
codegen_flags: <defaults>
</compile_context>

<pallas_src>
import math

import jax
import jax.numpy as jnp
from jax.experimental import pallas as pl
from jax.experimental.pallas import tpu as pltpu


def _scale_kernel(alpha_ref, x_ref, o_ref):
    # f32 opmath, then cast back to the tile's storage dtype. alpha lives in
    # SMEM, so distinct alpha values share one compiled kernel.
    alpha = alpha_ref[0]
    o_ref[...] = (x_ref[...].astype(jnp.float32) * alpha).astype(o_ref.dtype)


def _choose_lanes(n: int) -> int:
    """Widest lane count (multiple of 128) dividing n -> unmasked lane-dense vst."""
    for lanes in (1024, 512, 256, 128):
        if n % lanes == 0:
            return lanes
    return 0  # not lane-aligned; caller uses the ragged (1, n) path


def _generation_block_params():
    """(target_block_bytes, vmem_limit_bytes | None) per TPU generation."""
    kind = ""
    try:
        kind = jax.devices()[0].device_kind.lower()
    except Exception:
        pass
    if "v7" in kind or "tpu7" in kind:
        # ~3.2 TB/s HBM: big blocks amortize per-step overhead; 64 MiB phys
        # VMEM -> explicit 48 MiB scoped budget for 4 x 8 MiB resident bufs.
        return 8 << 20, 48 << 20
    if "v6" in kind:
        return 4 << 20, None        # 16 MiB resident < 32 MiB scoped default
    if "v5e" in kind or "v5 lite" in kind or "v5lite" in kind:
        return 3 << 20, None        # 12 MiB resident < 16 MiB scoped default
    return 2 << 20, None            # conservative fallback (unknown chip)


def scalar_multiply(x: jax.Array, alpha: float, *,
                    xla_fallback_bytes: int = 256 * 1024) -> jax.Array:
    """alpha * x via a Pallas TPU kernel (ScalarMultiply.forward)."""
    dtype = x.dtype
    orig_shape = x.shape
    n = x.size
    if n == 0:
        return x

    if not jnp.issubdtype(dtype, jnp.floating):
        # TODO(synk): integer inputs follow PyTorch promotion (float scalar *
        # int tensor -> float tensor); left to XLA, not worth a kernel.
        return jnp.float32(alpha) * x

    itemsize = jnp.dtype(dtype).itemsize
    if n * itemsize < xla_fallback_bytes:
        # Tiny tensors: kernel dispatch / pipeline warm-up dominates; XLA is
        # already at roofline.  Same f32 opmath as the kernel.
        return (x.astype(jnp.float32) * jnp.float32(alpha)).astype(dtype)

    target_block_bytes, vmem_limit = _generation_block_params()
    # Packed-sublane multiple: 8 rows (f32), 16 (bf16/f16), 32 (int8/fp8).
    mult = 8 * max(1, 4 // itemsize)

    lanes = _choose_lanes(n)
    if lanes:
        # Fast path: metadata-only reshape to a lane-dense slab.
        x2d = x.reshape(-1, lanes)
        rows = x2d.shape[0]
        tile_rows = max(mult,
                        (target_block_bytes // (lanes * itemsize)) // mult * mult)
        if tile_rows >= rows:
            if rows > mult and rows * lanes * itemsize > (1 << 20):
                # Force >= 2 grid steps so ("parallel",) can use both v7x TCs.
                half = pl.cdiv(rows, 2)
                tile_rows = min(rows, ((half + mult - 1) // mult) * mult)
            else:
                tile_rows = rows    # single full-extent block (always legal)
        grid = (pl.cdiv(rows, tile_rows),)
        block = (tile_rows, lanes)
        index_map = lambda i: (i, 0)
    else:
        # Rare unaligned path: (1, n) slab, ragged last block masked by
        # Pallas -> still exactly one HBM read + one write (no pad / slice).
        x2d = x.reshape(1, -1)
        # A (1, L) block pads to a full sublane tile in VMEM (~32 B per lane
        # regardless of dtype), so budget L by VMEM footprint, not data size.
        tile_lanes = max(128, (target_block_bytes // 32) // 128 * 128)
        if tile_lanes >= n:
            tile_lanes = n          # single full-extent block
        grid = (pl.cdiv(n, tile_lanes),)
        block = (1, tile_lanes)
        index_map = lambda i: (0, i)

    cp_kwargs = dict(dimension_semantics=("parallel",))
    if vmem_limit is not None:
        cp_kwargs["vmem_limit_bytes"] = vmem_limit

    alpha_arr = jnp.full((1,), alpha, dtype=jnp.float32)

    out2d = pl.pallas_call(
        _scale_kernel,
        out_shape=jax.ShapeDtypeStruct(x2d.shape, dtype),
        grid=grid,
        in_specs=[
            pl.BlockSpec(memory_space=pltpu.MemorySpace.SMEM),  # alpha scalar
            pl.BlockSpec(block, index_map),
        ],
        out_specs=pl.BlockSpec(block, index_map),
        compiler_params=pltpu.CompilerParams(**cp_kwargs),
    )(alpha_arr, x2d)

    return out2d.reshape(orig_shape)


if __name__ == "__main__":
    alpha = 1.0 / math.sqrt(2.0)  # deterministic
    k0, k1, k2, k3 = jax.random.split(jax.random.PRNGKey(0), 4)

    # Small shape from the module spec; force the Pallas path (the default
    # small-input fallback would otherwise hand this to XLA).
    x = jax.random.normal(k0, (2, 4, 16, 16), dtype=jnp.float32)
    y = jax.block_until_ready(scalar_multiply(x, alpha, xla_fallback_bytes=0))
    assert y.shape == x.shape and y.dtype == x.dtype
    assert jnp.allclose(y, alpha * x, atol=1e-6, rtol=1e-6)

    # Larger aligned shape: multi-block grid (>= 2 steps) on the default path.
    x_big = jax.random.normal(k1, (8, 512, 256), dtype=jnp.float32)  # 4 MiB
    y_big = jax.block_until_ready(scalar_multiply(x_big, alpha))
    assert jnp.allclose(y_big, alpha * x_big, atol=1e-6, rtol=1e-6)

    # bf16 path (f32 opmath in-kernel, cast back to bf16).
    x_bf = jax.random.normal(k2, (4, 128, 256), dtype=jnp.bfloat16)
    y_bf = jax.block_until_ready(
        scalar_multiply(x_bf, alpha, xla_fallback_bytes=0))
    assert y_bf.dtype == jnp.bfloat16
    ref_bf = (x_bf.astype(jnp.float32) * jnp.float32(alpha)).astype(jnp.bfloat16)
    assert jnp.allclose(y_bf.astype(jnp.float32), ref_bf.astype(jnp.float32),
                        atol=1e-2, rtol=1e-2)

    # Non-128-aligned shape: ragged (1, n) path, no pad / slice HBM passes.
    x_odd = jax.random.normal(k3, (3, 5, 7), dtype=jnp.float32)
    y_odd = jax.block_until_ready(
        scalar_multiply(x_odd, alpha, xla_fallback_bytes=0))
    assert y_odd.shape == x_odd.shape
    assert jnp.allclose(y_odd, alpha * x_odd, atol=1e-6, rtol=1e-6)

    print("KERNEL_OK")
</pallas_src>

<mosaic_0001>
module attributes {stable_mosaic.version = 11 : i64} {
  func.func @_scale_kernel(%arg0: i32, %arg1: memref<1xf32, #tpu.memory_space<smem>>, %arg2: memref<2x1024xf32, #tpu.memory_space<vmem>>, %arg3: memref<2x1024xf32, #tpu.memory_space<vmem>>) attributes {dimension_semantics = [#tpu.dimension_semantics<parallel>], iteration_bounds = array<i64: 1>, scalar_prefetch = 0 : i64, scratch_operands = 0 : i64, tpu.core_type = #tpu.core_type<tc>, window_params = [{transform_indices = @transform_0, window_bounds = array<i64: 1>}, {transform_indices = @transform_1, window_bounds = array<i64: 2, 1024>}, {transform_indices = @transform_2, window_bounds = array<i64: 2, 1024>}]} {
    %c0 = arith.constant 0 : index
    %0 = memref.load %arg1[%c0] : memref<1xf32, #tpu.memory_space<smem>>
    %c0_0 = arith.constant 0 : index
    %c0_1 = arith.constant 0 : index
    %1 = vector.load %arg2[%c0_0, %c0_1] : memref<2x1024xf32, #tpu.memory_space<vmem>>, vector<2x1024xf32>
    %2 = vector.broadcast %0 : f32 to vector<2x1024xf32>
    %3 = arith.mulf %1, %2 : vector<2x1024xf32>
    %c0_2 = arith.constant 0 : index
    %c0_3 = arith.constant 0 : index
    %4 = vector.load %arg3[%c0_2, %c0_3] : memref<2x1024xf32, #tpu.memory_space<vmem>>, vector<2x1024xf32>
    tpu.vector_store %arg3[%c0_2, %c0_3], %3 {strides = array<i32>} : memref<2x1024xf32, #tpu.memory_space<vmem>>, vector<2x1024xf32>,
    return
  }
  func.func @transform_0(%arg0: i32) -> i32 {
    %c0_i32 = arith.constant 0 : i32
    %c0_i32_0 = arith.constant 0 : i32
    return %c0_i32 : i32
  }
  func.func @transform_1(%arg0: i32) -> (i32, i32) {
    %c0_i32 = arith.constant 0 : i32
    %c0_i32_0 = arith.constant 0 : i32
    return %arg0, %c0_i32 : i32, i32
  }
  func.func @transform_2(%arg0: i32) -> (i32, i32) {
    %c0_i32 = arith.constant 0 : i32
    %c0_i32_0 = arith.constant 0 : i32
    return %arg0, %c0_i32 : i32, i32
  }
}

</mosaic_0001>

<llo_original>
// kernel: tpu_custom_call.1
$region0: #{tpu_custom_call.1}
  #allocation0 [shape = 'u32[]', space=smem, size = 0x4, offset = 0x4, fixed_abs, tag = 'smem constant byte address 0x4 - core index']
  #allocation1 [shape = 'u32[144,128]{1,0:T(1,128)}', space=vmem, size = 0x12000, scoped, tag = 'internal scratch']
  #allocation2 [shape = 'f32[1]{0:T(128)S(6)}', space=smem, size = 0x200, scoped, tag = 'scoped memory for tpu_custom_call.1']
  %s0 = inlined_call_operand.<no memory space> [shape: f32[1], index: 0, kind: input, shape index: {}]
  %s1 = inlined_call_operand.hbm [shape: f32[2,1024], index: 1, kind: input, shape index: {}]
  %s2 = inlined_call_operand.hbm [shape: f32[2,1024], index: 2, kind: output, shape index: {}]
  %s3 = sld [smem:[#allocation0]]
  $region22: #{tpu_custom_call.1} parent=0
    _
  %s5 = ssub.s32 1, %s3
  %s6 = scalar_select 0, %s5, %s3
  %7 = sst [smem:[#allocation2]] %s0
  $region1: #{tpu_custom_call.1} parent=0
    #allocation3 [shape = 'u8[8192]{0}', space=vmem, size = 0x2000, scoped, tag = 'input window, operand 1, single buffered']
    #allocation4 [shape = 's32[1]{0}', space=sflag, size = 0x4, scoped, tag = 'scoped memory for tpu_custom_call.1']
    #allocation5 [shape = 's32[1]{0}', space=sflag, size = 0x4, scoped, tag = 'scoped memory for tpu_custom_call.1']
    #allocation6 [shape = 'u8[8192]{0}', space=vmem, size = 0x2000, scoped, tag = 'output window, operand 0, single buffered']
    %8 = vsyncpa [#allocation4], 0
    %9 = vsyncpa [#allocation5], 0
    // Predicated region
    $region2: #{tpu_custom_call.1} parent=1 // pred_check
      _
    $region3: #{tpu_custom_call.1} parent=1 // pred_check_branch
      %11 = sbr.rel (0) target = $region5
    $region4: #{tpu_custom_call.1} parent=1 // pred_region
      _
    $region5: #{tpu_custom_call.1} parent=1 // pred_fallthru
      _
    // Predicated region
    $region6: #{tpu_custom_call.1} parent=1 // pred_check
      _
    $region7: #{tpu_custom_call.1} parent=1 // pred_check_branch
      %13 = sbr.rel (0) target = $region9
    $region8: #{tpu_custom_call.1} parent=1 // pred_region
      %s15 = ssub.s32 256, 256
      %16 = vsyncadd [#allocation4], %s15
      %s18 = sshll.u32 [#allocation3], 4
      %s19 = int_to_ptr.vmem [resolvable:$true] %s18
      %21 = dma.hbm_to_vmem [thread:$0]  %s1, 256, %s19, [#allocation4]
    $region9: #{tpu_custom_call.1} parent=1 // pred_fallthru
      _
    // Predicated region
    $region10: #{tpu_custom_call.1} parent=1 // pred_check
      _
    $region11: #{tpu_custom_call.1} parent=1 // pred_check_branch
      %23 = sbr.rel (0) target = $region13
    $region12: #{tpu_custom_call.1} parent=1 // pred_region
      %24 = dma.done [#allocation4], 256
    $region13: #{tpu_custom_call.1} parent=1 // pred_fallthru
      _
    %s25 = sld [smem:[#allocation2]]
    %v26 = vld [vmem:[#allocation3] sm:$0xff]
    %v27 = vld [vmem:[#allocation3 + $0x8] sm:$0xff]
    %v28 = vstv %s25
    %v29 = vmul.f32 %v26, %v28
    %v30 = vmul.f32 %v27, %v28
    %31 = vst [vmem:[#allocation6] sm:$0xff] %v29
    %32 = vst [vmem:[#allocation6 + $0x8] sm:$0xff] %v30
    // Predicated region
    $region14: #{tpu_custom_call.1} parent=1 // pred_check
      _
    $region15: #{tpu_custom_call.1} parent=1 // pred_check_branch
      %34 = sbr.rel (0) target = $region17
    $region16: #{tpu_custom_call.1} parent=1 // pred_region
      %s36 = ssub.s32 256, 256
      %37 = vsyncadd [#allocation5], %s36
      %s39 = sshll.u32 [#allocation6], 4
      %s40 = int_to_ptr.vmem [resolvable:$true] %s39
      %42 = dma.vmem_to_hbm [thread:$0]  %s40, 256, %s2, [#allocation5]
    $region17: #{tpu_custom_call.1} parent=1 // pred_fallthru
      _
    // Predicated region
    $region18: #{tpu_custom_call.1} parent=1 // pred_check
      _
    $region19: #{tpu_custom_call.1} parent=1 // pred_check_branch
      %44 = sbr.rel (0) target = $region21
    $region20: #{tpu_custom_call.1} parent=1 // pred_region
      %45 = dma.done [#allocation5], 256
    $region21: #{tpu_custom_call.1} parent=1 // pred_fallthru
      _
    %46 = vsyncpa [#allocation4], 1
    %47 = vsyncpa [#allocation5], 1

</llo_original>
